<compile_context>
chip_gen: v7x
topology: tpu7x:2x2x1
jax: 0.10.0
libtpu: 0.0.40
codegen_flags: <defaults>
</compile_context>

<pallas_src>
import functools

import jax
import jax.numpy as jnp
from jax.experimental import pallas as pl
from jax.experimental.pallas import tpu as pltpu

INPUT_NODE = 2
OUTPUT_NODE = 1


def rawnet_kernel(xt_ref, w1_ref, b1_ref, w2_ref, b2_ref, w3_ref, b3_ref,
                  o_ref, *, act_dtype):
    xt = xt_ref[...]                      # (2, TB)  f32, batch on lanes
    w1 = w1_ref[...]                      # (H, 2)   f32
    b1 = b1_ref[...]                      # (H, 1)   f32

    # --- lin1 (K=2): VPU broadcast mul-add; an MXU pass would be >98% padding.
    pre1 = w1[:, 0:1] * xt[0:1, :] + w1[:, 1:2] * xt[1:2, :] + b1    # (H, TB) f32
    h1 = jnp.tanh(pre1.astype(act_dtype))                            # (H, TB)

    # --- lin2 (H -> 2H): the only real matmul -> MXU, f32 accumulation.
    #     w2 arrives already in act_dtype (pre-cast in the wrapper).
    pre2 = jnp.dot(w2_ref[...], h1,
                   preferred_element_type=jnp.float32) + b2_ref[...]  # (2H, TB) f32
    h2 = jnp.tanh(pre2.astype(act_dtype))                             # (2H, TB)

    # --- lin3 (N=1): elementwise multiply + sublane reduce (XLU), no MXU.
    z = jnp.sum(w3_ref[...] * h2, axis=0, keepdims=True) + b3_ref[...]  # (1, TB) f32
    o_ref[...] = jax.nn.sigmoid(z)                                    # lane-dense row


def _choose_tile_b(B):
    # Big lane-aligned tiles amortise per-grid-step overhead; keep >= 2 grid
    # steps when possible so v7x's two TensorCores both get work.
    if B % 128 == 0 and B >= 256:
        for cand in (2048, 1024, 512, 256, 128):
            if B % cand == 0 and B // cand >= 2:
                return cand
    # small / odd batch: one full-batch block (block shape == full array dims)
    return B


def rawnet_forward(x, params, *, tile_b=None, act_dtype=jnp.float32):
    """x: (B, 2) float32.  params: w1 (H,2), b1 (H,1), w2 (2H,H), b2 (2H,1),
    w3 (2H,1), b3 (1,1).  Returns (B, 1) float32 (same as the PyTorch module)."""
    B, in_dim = x.shape
    assert in_dim == INPUT_NODE
    H = params["w1"].shape[0]

    if tile_b is None:
        tile_b = _choose_tile_b(B)
    assert B % tile_b == 0, "batch must be a multiple of tile_b"
    assert tile_b == B or tile_b % 128 == 0, "partial tiles must be lane-aligned"

    x_t = x.T                           # (2, B): wrapper-side layout plumbing only
    w2 = params["w2"].astype(act_dtype)  # pre-cast once; stays VMEM-resident
    grid = (B // tile_b,)

    def rep(i):                          # constant index -> block stays VMEM-resident
        return (0, 0)

    kernel = functools.partial(rawnet_kernel, act_dtype=act_dtype)

    out_t = pl.pallas_call(
        kernel,
        out_shape=jax.ShapeDtypeStruct((OUTPUT_NODE, B), jnp.float32),
        grid_spec=pl.GridSpec(
            grid=grid,
            in_specs=[
                pl.BlockSpec((INPUT_NODE, tile_b), lambda i: (0, i)),  # x.T tile
                pl.BlockSpec((H, INPUT_NODE), rep),                    # w1
                pl.BlockSpec((H, 1), rep),                             # b1
                pl.BlockSpec((2 * H, H), rep),                         # w2 (act_dtype)
                pl.BlockSpec((2 * H, 1), rep),                         # b2
                pl.BlockSpec((2 * H, OUTPUT_NODE), rep),               # w3
                pl.BlockSpec((1, OUTPUT_NODE), rep),                   # b3
            ],
            out_specs=pl.BlockSpec((OUTPUT_NODE, tile_b), lambda i: (0, i)),
        ),
        compiler_params=pltpu.CompilerParams(
            dimension_semantics=("parallel",)
        ),
    )(x_t, params["w1"], params["b1"], w2, params["b2"],
      params["w3"], params["b3"])

    return out_t.reshape(B, OUTPUT_NODE)   # back to PyTorch's (B, 1)


def init_params(key, num_hid):
    """nn.Linear-style U(-1/sqrt(fan_in), 1/sqrt(fan_in)) init, stored in the
    layout the kernel consumes: w* in PyTorch (out, in) form, biases as columns,
    and w3 transposed to (2H, 1) for the sublane reduce."""
    def linear(k, fan_in, fan_out):
        kw, kb = jax.random.split(k)
        bound = 1.0 / jnp.sqrt(jnp.float32(fan_in))
        w = jax.random.uniform(kw, (fan_out, fan_in), jnp.float32, -bound, bound)
        b = jax.random.uniform(kb, (fan_out, 1), jnp.float32, -bound, bound)
        return w, b

    k1, k2, k3 = jax.random.split(key, 3)
    w1, b1 = linear(k1, INPUT_NODE, num_hid)
    w2, b2 = linear(k2, num_hid, 2 * num_hid)
    w3, b3 = linear(k3, 2 * num_hid, OUTPUT_NODE)
    return {"w1": w1, "b1": b1, "w2": w2, "b2": b2, "w3": w3.T, "b3": b3}


def rawnet_reference(x, p):
    h1 = jnp.tanh(x @ p["w1"].T + p["b1"].T)
    h2 = jnp.tanh(h1 @ p["w2"].T + p["b2"].T)
    return jax.nn.sigmoid(h2 @ p["w3"] + p["b3"].T)


def _bf16_activation_ok():
    # bf16 tanh/sigmoid only helps on chips with a bf16 VPU/EUP path (v6e/v7x);
    # keep f32 on v5e (and anything we cannot identify).
    try:
        kind = jax.devices()[0].device_kind.lower()
    except Exception:
        return False
    return ("v6" in kind) or ("v7" in kind)


if __name__ == "__main__":
    key = jax.random.PRNGKey(0)
    kx, kp = jax.random.split(key)

    num_hid = 32
    batch = 256                       # lane-aligned; auto-tiles into 2 x 128 rows
    x = jax.random.normal(kx, (batch, INPUT_NODE), jnp.float32)
    params = init_params(kp, num_hid)

    ref = rawnet_reference(x, params)

    # f32 path (all generations): tight check against the pure-JAX reference.
    fwd_f32 = jax.jit(functools.partial(rawnet_forward, act_dtype=jnp.float32))
    out = jax.block_until_ready(fwd_f32(x, params))
    assert out.shape == (batch, OUTPUT_NODE)
    assert jnp.allclose(out, ref, atol=1e-5, rtol=1e-5)

    # fast path: bf16 activations on v6e/v7x, f32 elsewhere (looser tolerance).
    act_dtype = jnp.bfloat16 if _bf16_activation_ok() else jnp.float32
    fwd_fast = jax.jit(functools.partial(rawnet_forward, act_dtype=act_dtype))
    out_fast = jax.block_until_ready(fwd_fast(x, params))
    tol = 3e-2 if act_dtype == jnp.bfloat16 else 1e-5
    assert jnp.allclose(out_fast, ref, atol=tol, rtol=tol)

    print("KERNEL_OK")
</pallas_src>

<mosaic_0001>
module attributes {stable_mosaic.version = 11 : i64} {
  func.func @rawnet_kernel(%arg0: i32, %arg1: memref<2x128xf32, #tpu.memory_space<vmem>>, %arg2: memref<32x2xf32, #tpu.memory_space<vmem>>, %arg3: memref<32x1xf32, #tpu.memory_space<vmem>>, %arg4: memref<64x32xf32, #tpu.memory_space<vmem>>, %arg5: memref<64x1xf32, #tpu.memory_space<vmem>>, %arg6: memref<64x1xf32, #tpu.memory_space<vmem>>, %arg7: memref<1x1xf32, #tpu.memory_space<vmem>>, %arg8: memref<1x128xf32, #tpu.memory_space<vmem>>) attributes {dimension_semantics = [#tpu.dimension_semantics<parallel>], iteration_bounds = array<i64: 2>, scalar_prefetch = 0 : i64, scratch_operands = 0 : i64, tpu.core_type = #tpu.core_type<tc>, window_params = [{transform_indices = @transform_0, window_bounds = array<i64: 2, 128>}, {pipeline_mode = #tpu.pipeline_mode<synchronous>, transform_indices = @transform_1, window_bounds = array<i64: 32, 2>}, {pipeline_mode = #tpu.pipeline_mode<synchronous>, transform_indices = @transform_2, window_bounds = array<i64: 32, 1>}, {pipeline_mode = #tpu.pipeline_mode<synchronous>, transform_indices = @transform_3, window_bounds = array<i64: 64, 32>}, {pipeline_mode = #tpu.pipeline_mode<synchronous>, transform_indices = @transform_4, window_bounds = array<i64: 64, 1>}, {pipeline_mode = #tpu.pipeline_mode<synchronous>, transform_indices = @transform_5, window_bounds = array<i64: 64, 1>}, {pipeline_mode = #tpu.pipeline_mode<synchronous>, transform_indices = @transform_6, window_bounds = array<i64: 1, 1>}, {transform_indices = @transform_7, window_bounds = array<i64: 1, 128>}]} {
    %c0 = arith.constant 0 : index
    %c0_0 = arith.constant 0 : index
    %0 = vector.load %arg1[%c0, %c0_0] : memref<2x128xf32, #tpu.memory_space<vmem>>, vector<2x128xf32>
    %c0_1 = arith.constant 0 : index
    %c0_2 = arith.constant 0 : index
    %1 = vector.load %arg2[%c0_1, %c0_2] : memref<32x2xf32, #tpu.memory_space<vmem>>, vector<32x2xf32>
    %c0_3 = arith.constant 0 : index
    %c0_4 = arith.constant 0 : index
    %2 = vector.load %arg3[%c0_3, %c0_4] : memref<32x1xf32, #tpu.memory_space<vmem>>, vector<32x1xf32>
    %3 = vector.extract_strided_slice %1 {offsets = [0, 0], sizes = [32, 1], strides = [1, 1]} : vector<32x2xf32> to vector<32x1xf32>
    %4 = vector.extract_strided_slice %0 {offsets = [0, 0], sizes = [1, 128], strides = [1, 1]} : vector<2x128xf32> to vector<1x128xf32>
    %5 = vector.broadcast %3 : vector<32x1xf32> to vector<32x128xf32>
    %6 = vector.broadcast %4 : vector<1x128xf32> to vector<32x128xf32>
    %7 = arith.mulf %5, %6 : vector<32x128xf32>
    %8 = vector.extract_strided_slice %1 {offsets = [0, 1], sizes = [32, 1], strides = [1, 1]} : vector<32x2xf32> to vector<32x1xf32>
    %9 = vector.extract_strided_slice %0 {offsets = [1, 0], sizes = [1, 128], strides = [1, 1]} : vector<2x128xf32> to vector<1x128xf32>
    %10 = vector.broadcast %8 : vector<32x1xf32> to vector<32x128xf32>
    %11 = vector.broadcast %9 : vector<1x128xf32> to vector<32x128xf32>
    %12 = arith.mulf %10, %11 : vector<32x128xf32>
    %13 = arith.addf %7, %12 : vector<32x128xf32>
    %14 = vector.broadcast %2 : vector<32x1xf32> to vector<32x128xf32>
    %15 = arith.addf %13, %14 : vector<32x128xf32>
    %16 = math.tanh %15 : vector<32x128xf32>
    %c0_5 = arith.constant 0 : index
    %c0_6 = arith.constant 0 : index
    %17 = vector.load %arg4[%c0_5, %c0_6] : memref<64x32xf32, #tpu.memory_space<vmem>>, vector<64x32xf32>
    %cst = arith.constant dense<0.000000e+00> : vector<64x128xf32>
    %18 = tpu.matmul %17, %16, %cst {dimension_numbers = #tpu.dot_dimension_numbers<[1], [0], [0], [1], [0, 0, 1, 1], [], []>} : vector<64x32xf32>, vector<32x128xf32>, vector<64x128xf32> -> vector<64x128xf32>
    %c0_7 = arith.constant 0 : index
    %c0_8 = arith.constant 0 : index
    %19 = vector.load %arg5[%c0_7, %c0_8] : memref<64x1xf32, #tpu.memory_space<vmem>>, vector<64x1xf32>
    %20 = vector.broadcast %19 : vector<64x1xf32> to vector<64x128xf32>
    %21 = arith.addf %18, %20 : vector<64x128xf32>
    %22 = math.tanh %21 : vector<64x128xf32>
    %c0_9 = arith.constant 0 : index
    %c0_10 = arith.constant 0 : index
    %23 = vector.load %arg6[%c0_9, %c0_10] : memref<64x1xf32, #tpu.memory_space<vmem>>, vector<64x1xf32>
    %24 = vector.broadcast %23 : vector<64x1xf32> to vector<64x128xf32>
    %25 = arith.mulf %24, %22 : vector<64x128xf32>
    %cst_11 = arith.constant dense<0.000000e+00> : vector<128xf32>
    %26 = vector.multi_reduction <add>, %25, %cst_11 [0] : vector<64x128xf32> to vector<128xf32>
    %27 = vector.shape_cast %26 : vector<128xf32> to vector<1x128xf32>
    %c0_12 = arith.constant 0 : index
    %c0_13 = arith.constant 0 : index
    %28 = vector.load %arg7[%c0_12, %c0_13] : memref<1x1xf32, #tpu.memory_space<vmem>>, vector<1x1xf32>
    %29 = vector.broadcast %28 : vector<1x1xf32> to vector<1x128xf32>
    %30 = arith.addf %27, %29 : vector<1x128xf32>
    %31 = arith.negf %30 : vector<1x128xf32>
    %32 = math.exp %31 : vector<1x128xf32>
    %cst_14 = arith.constant 1.000000e+00 : f32
    %33 = vector.broadcast %cst_14 : f32 to vector<1x128xf32>
    %34 = arith.addf %33, %32 : vector<1x128xf32>
    %35 = arith.divf %33, %34 : vector<1x128xf32>
    %c0_15 = arith.constant 0 : index
    %c0_16 = arith.constant 0 : index
    %36 = vector.load %arg8[%c0_15, %c0_16] : memref<1x128xf32, #tpu.memory_space<vmem>>, vector<1x128xf32>
    tpu.vector_store %arg8[%c0_15, %c0_16], %35 {strides = array<i32>} : memref<1x128xf32, #tpu.memory_space<vmem>>, vector<1x128xf32>,
    return
  }
  func.func @transform_0(%arg0: i32) -> (i32, i32) {
    %c0_i32 = arith.constant 0 : i32
    %c0_i32_0 = arith.constant 0 : i32
    return %c0_i32, %arg0 : i32, i32
  }
  func.func @transform_1(%arg0: i32) -> (i32, i32) {
    %c0_i32 = arith.constant 0 : i32
    %c0_i32_0 = arith.constant 0 : i32
    %c0_i32_1 = arith.constant 0 : i32
    return %c0_i32, %c0_i32_0 : i32, i32
  }
  func.func @transform_2(%arg0: i32) -> (i32, i32) {
    %c0_i32 = arith.constant 0 : i32
    %c0_i32_0 = arith.constant 0 : i32
    %c0_i32_1 = arith.constant 0 : i32
    return %c0_i32, %c0_i32_0 : i32, i32
  }
  func.func @transform_3(%arg0: i32) -> (i32, i32) {
    %c0_i32 = arith.constant 0 : i32
    %c0_i32_0 = arith.constant 0 : i32
    %c0_i32_1 = arith.constant 0 : i32
    return %c0_i32, %c0_i32_0 : i32, i32
  }
  func.func @transform_4(%arg0: i32) -> (i32, i32) {
    %c0_i32 = arith.constant 0 : i32
    %c0_i32_0 = arith.constant 0 : i32
    %c0_i32_1 = arith.constant 0 : i32
    return %c0_i32, %c0_i32_0 : i32, i32
  }
  func.func @transform_5(%arg0: i32) -> (i32, i32) {
    %c0_i32 = arith.constant 0 : i32
    %c0_i32_0 = arith.constant 0 : i32
    %c0_i32_1 = arith.constant 0 : i32
    return %c0_i32, %c0_i32_0 : i32, i32
  }
  func.func @transform_6(%arg0: i32) -> (i32, i32) {
    %c0_i32 = arith.constant 0 : i32
    %c0_i32_0 = arith.constant 0 : i32
    %c0_i32_1 = arith.constant 0 : i32
    return %c0_i32, %c0_i32_0 : i32, i32
  }
  func.func @transform_7(%arg0: i32) -> (i32, i32) {
    %c0_i32 = arith.constant 0 : i32
    %c0_i32_0 = arith.constant 0 : i32
    return %c0_i32, %arg0 : i32, i32
  }
}

</mosaic_0001>

<llo_original>
// kernel: rawnet_forward.1
$region0: #{rawnet_forward.1}
  #allocation0 [shape = 'u32[]', space=smem, size = 0x4, offset = 0x4, fixed_abs, tag = 'smem constant byte address 0x4 - core index']
  #allocation1 [shape = 'u32[144,128]{1,0:T(1,128)}', space=vmem, size = 0x12000, scoped, tag = 'internal scratch']
  #allocation2 [shape = 'f32[1,1]{1,0:T(1,128)S(1)}', space=vmem, size = 0x200, scoped, tag = 'scoped memory for rawnet_forward.1']
  %s0 = inlined_call_operand.vmem [shape: f32[2,256], index: 0, kind: input, shape index: {}]
  %s1 = inlined_call_operand.vmem [shape: f32[32,2], index: 1, kind: input, shape index: {}]
  %s2 = inlined_call_operand.vmem [shape: f32[32,1], index: 2, kind: input, shape index: {}]
  %s3 = inlined_call_operand.vmem [shape: f32[64,32], index: 3, kind: input, shape index: {}]
  %s4 = inlined_call_operand.vmem [shape: f32[64,1], index: 4, kind: input, shape index: {}]
  %s5 = inlined_call_operand.vmem [shape: f32[64,1], index: 5, kind: input, shape index: {}]
  %s6 = inlined_call_operand.<no memory space> [shape: f32[1,1], index: 6, kind: input, shape index: {}]
  %s7 = inlined_call_operand.hbm [shape: f32[1,256], index: 7, kind: output, shape index: {}]
  %s8 = sld [smem:[#allocation0]]
  $region61: #{rawnet_forward.1} parent=0
    _
  %s10 = ssub.s32 1, %s8
  %s11 = scalar_select 0, %s10, %s8
  %v12 = vstv %s6
  %13 = vst [vmem:[#allocation2] sm:$0x1] %v12
  $region1: #{rawnet_forward.1} parent=0
    #allocation3 [shape = 'u8[1024]{0}', space=vmem, size = 0x400, scoped, tag = 'output window, operand 0']
    #allocation4 [shape = 's32[2]{0}', space=sflag, size = 0x8, scoped, tag = 'scoped memory for rawnet_forward.1']
    %14 = vsyncpa [#allocation4], 0
    %s15 = scalar_lea.sflag [#allocation4], 1
    %16 = vsyncpa %s15, 0
    loop: start=0, step=1, limit=4
    $region2: #{rawnet_forward.1} parent=1 // loop_pre_header
      _
    $region3: #{rawnet_forward.1} parent=1 // loop_header
      %s18 = sphi 0, %s22
      %p19 = scmp.ge.s32.totalorder %s18, 4
      %s28 = sphi 0, %s30
      %s31 = sphi 0, %s28
      %s32 = sphi 0, %s31
      %s48 = sphi 0, %s32
      %s52 = sphi 0, %s52
      %s54 = sphi 0, %s52
      %s55 = sphi 0, %s54
      %s69 = sphi 0, %s55
      %s73 = sphi 0, %s73
      %s75 = sphi 0, %s73
      %s76 = sphi 0, %s75
      %s90 = sphi 0, %s76
      %s94 = sphi 0, %s94
      %s96 = sphi 0, %s94
      %s97 = sphi 0, %s96
      %s111 = sphi 0, %s97
      %s115 = sphi 0, %s115
      %s117 = sphi 0, %s115
      %s118 = sphi 0, %s117
      %s132 = sphi 0, %s118
      %s136 = sphi 0, %s136
      %s138 = sphi 0, %s136
      %s139 = sphi 0, %s138
      %s153 = sphi 0, %s139
      %s157 = sphi 0, %s157
      %s159 = sphi 0, %s157
      %s160 = sphi 0, %s159
      %s174 = sphi 0, %s160
      %s180 = sphi 0, %s182
      %s183 = sphi 0, %s180
      %s184 = sphi 0, %s183
      %s200 = sphi 0, %s184
    $region4: #{rawnet_forward.1} parent=1 // loop_header_branch
      %21 = sbr.rel (%p19) target = $region8
    $region5: #{rawnet_forward.1} parent=1 // loop_body
      %s23 = ssub.s32 %s18, 1
      %s24 = ssub.s32 %s18, 2
      %s25 = sadd.s32 %s18, 1
      %s26 = ssub.s32 %s18, %s25
      %p27 = scmp.eq.s32.totalorder %s26, 0
      %s29 = sadd.s32 %s28, 1
      %s30 = scalar_select %p27, %s28, %s29
      %p33 = pneg %p27
      %p34 = scmp.eq.s32.totalorder %s18, 1
      %p35 = por %p33, %p34
      %p36 = scmp.ne.s32.totalorder %s28, %s31
      %p37 = scmp.eq.s32.totalorder %s18, 0
      %p38 = por %p36, %p37
      %p39 = scmp.ne.s32.totalorder %s28, %s31
      %p40 = scmp.eq.s32.totalorder %s23, 1
      %p41 = por %p39, %p40
      %p42 = scmp.ne.s32.totalorder %s31, %s32
      %p43 = scmp.eq.s32.totalorder %s23, 0
      %p44 = por %p42, %p43
      %p45 = scmp.ne.s32.totalorder %s31, %s32
      %p46 = scmp.eq.s32.totalorder %s24, 1
      %p47 = por %p45, %p46
      %p49 = scmp.ne.s32.totalorder %s32, %s48
      %p50 = scmp.eq.s32.totalorder %s24, 0
      %p51 = por %p49, %p50
      %s53 = sadd.s32 %s52, 1
      %p56 = scmp.eq.s32.totalorder %s18, 1
      %p57 = scmp.ne.s32.totalorder %s52, %s54
      %p58 = scmp.eq.s32.totalorder %s18, 0
      %p59 = por %p57, %p58
      %p60 = scmp.ne.s32.totalorder %s52, %s54
      %p61 = scmp.eq.s32.totalorder %s23, 1
      %p62 = por %p60, %p61
      %p63 = scmp.ne.s32.totalorder %s54, %s55
      %p64 = scmp.eq.s32.totalorder %s23, 0
      %p65 = por %p63, %p64
      %p66 = scmp.ne.s32.totalorder %s54, %s55
      %p67 = scmp.eq.s32.totalorder %s24, 1
      %p68 = por %p66, %p67
      %p70 = scmp.ne.s32.totalorder %s55, %s69
      %p71 = scmp.eq.s32.totalorder %s24, 0
      %p72 = por %p70, %p71
      %s74 = sadd.s32 %s73, 1
      %p77 = scmp.eq.s32.totalorder %s18, 1
      %p78 = scmp.ne.s32.totalorder %s73, %s75
      %p79 = scmp.eq.s32.totalorder %s18, 0
      %p80 = por %p78, %p79
      %p81 = scmp.ne.s32.totalorder %s73, %s75
      %p82 = scmp.eq.s32.totalorder %s23, 1
      %p83 = por %p81, %p82
      %p84 = scmp.ne.s32.totalorder %s75, %s76
      %p85 = scmp.eq.s32.totalorder %s23, 0
      %p86 = por %p84, %p85
      %p87 = scmp.ne.s32.totalorder %s75, %s76
      %p88 = scmp.eq.s32.totalorder %s24, 1
      %p89 = por %p87, %p88
      %p91 = scmp.ne.s32.totalorder %s76, %s90
      %p92 = scmp.eq.s32.totalorder %s24, 0
      %p93 = por %p91, %p92
      %s95 = sadd.s32 %s94, 1
      %p98 = scmp.eq.s32.totalorder %s18, 1
      %p99 = scmp.ne.s32.totalorder %s94, %s96
      %p100 = scmp.eq.s32.totalorder %s18, 0
      %p101 = por %p99, %p100
      %p102 = scmp.ne.s32.totalorder %s94, %s96
      %p103 = scmp.eq.s32.totalorder %s23, 1
      %p104 = por %p102, %p103
      %p105 = scmp.ne.s32.totalorder %s96, %s97
      %p106 = scmp.eq.s32.totalorder %s23, 0
      %p107 = por %p105, %p106
      %p108 = scmp.ne.s32.totalorder %s96, %s97
      %p109 = scmp.eq.s32.totalorder %s24, 1
      %p110 = por %p108, %p109
      %p112 = scmp.ne.s32.totalorder %s97, %s111
      %p113 = scmp.eq.s32.totalorder %s24, 0
      %p114 = por %p112, %p113
      %s116 = sadd.s32 %s115, 1
      %p119 = scmp.eq.s32.totalorder %s18, 1
      %p120 = scmp.ne.s32.totalorder %s115, %s117
      %p121 = scmp.eq.s32.totalorder %s18, 0
      %p122 = por %p120, %p121
      %p123 = scmp.ne.s32.totalorder %s115, %s117
      %p124 = scmp.eq.s32.totalorder %s23, 1
      %p125 = por %p123, %p124
      %p126 = scmp.ne.s32.totalorder %s117, %s118
      %p127 = scmp.eq.s32.totalorder %s23, 0
      %p128 = por %p126, %p127
      %p129 = scmp.ne.s32.totalorder %s117, %s118
      %p130 = scmp.eq.s32.totalorder %s24, 1
      %p131 = por %p129, %p130
      %p133 = scmp.ne.s32.totalorder %s118, %s132
      %p134 = scmp.eq.s32.totalorder %s24, 0
      %p135 = por %p133, %p134
      %s137 = sadd.s32 %s136, 1
      %p140 = scmp.eq.s32.totalorder %s18, 1
      %p141 = scmp.ne.s32.totalorder %s136, %s138
      %p142 = scmp.eq.s32.totalorder %s18, 0
      %p143 = por %p141, %p142
      %p144 = scmp.ne.s32.totalorder %s136, %s138
      %p145 = scmp.eq.s32.totalorder %s23, 1
      %p146 = por %p144, %p145
      %p147 = scmp.ne.s32.totalorder %s138, %s139
      %p148 = scmp.eq.s32.totalorder %s23, 0
      %p149 = por %p147, %p148
      %p150 = scmp.ne.s32.totalorder %s138, %s139
      %p151 = scmp.eq.s32.totalorder %s24, 1
      %p152 = por %p150, %p151
      %p154 = scmp.ne.s32.totalorder %s139, %s153
      %p155 = scmp.eq.s32.totalorder %s24, 0
      %p156 = por %p154, %p155
      %s158 = sadd.s32 %s157, 1
      %p161 = scmp.eq.s32.totalorder %s18, 1
      %p162 = scmp.ne.s32.totalorder %s157, %s159
      %p163 = scmp.eq.s32.totalorder %s18, 0
      %p164 = por %p162, %p163
      %p165 = scmp.ne.s32.totalorder %s157, %s159
      %p166 = scmp.eq.s32.totalorder %s23, 1
      %p167 = por %p165, %p166
      %p168 = scmp.ne.s32.totalorder %s159, %s160
      %p169 = scmp.eq.s32.totalorder %s23, 0
      %p170 = por %p168, %p169
      %p171 = scmp.ne.s32.totalorder %s159, %s160
      %p172 = scmp.eq.s32.totalorder %s24, 1
      %p173 = por %p171, %p172
      %p175 = scmp.ne.s32.totalorder %s160, %s174
      %p176 = scmp.eq.s32.totalorder %s24, 0
      %p177 = por %p175, %p176
      %s178 = ssub.s32 %s18, %s25
      %p179 = scmp.eq.s32.totalorder %s178, 0
      %s181 = sadd.s32 %s180, 1
      %s182 = scalar_select %p179, %s180, %s181
      %p185 = pneg %p179
      %p186 = scmp.eq.s32.totalorder %s18, 1
      %p187 = por %p185, %p186
      %p188 = scmp.ne.s32.totalorder %s180, %s183
      %p189 = scmp.eq.s32.totalorder %s18, 0
      %p190 = por %p188, %p189
      %p191 = scmp.ne.s32.totalorder %s180, %s183
      %p192 = scmp.eq.s32.totalorder %s23, 1
      %p193 = por %p191, %p192
      %p194 = scmp.ne.s32.totalorder %s183, %s184
      %p195 = scmp.eq.s32.totalorder %s23, 0
      %p196 = por %p194, %p195
      %p197 = scmp.ne.s32.totalorder %s183, %s184
      %p198 = scmp.eq.s32.totalorder %s24, 1
      %p199 = por %p197, %p198
      %p201 = scmp.ne.s32.totalorder %s184, %s200
      %p202 = scmp.eq.s32.totalorder %s24, 0
      %p203 = por %p201, %p202
      %p204 = scmp.le.s32.totalorder 1, %s18
      %p205 = scmp.lt.s32.totalorder %s18, 3
      %p206 = pnand %p204, %p205
      %p207 = pneg %p206
      // Predicated region
      $region9: #{rawnet_forward.1} parent=5 // pred_check
        _
      $region10: #{rawnet_forward.1} parent=5 // pred_check_branch
        %209 = sbr.rel (%p206) target = $region12
      $region11: #{rawnet_forward.1} parent=5 // pred_region
        %s210 = ssub.s32 %s18, 1
        // Predicated region
        $region13: #{rawnet_forward.1} parent=11 // pred_check
          %p211 = pneg %p65
        $region14: #{rawnet_forward.1} parent=11 // pred_check_branch
          %213 = sbr.rel (%p211) target = $region16
        $region15: #{rawnet_forward.1} parent=11 // pred_region
          _
        $region16: #{rawnet_forward.1} parent=11 // pred_fallthru
          _
        // Predicated region
        $region17: #{rawnet_forward.1} parent=11 // pred_check
          %p214 = pneg %p86
        $region18: #{rawnet_forward.1} parent=11 // pred_check_branch
          %216 = sbr.rel (%p214) target = $region20
        $region19: #{rawnet_forward.1} parent=11 // pred_region
          _
        $region20: #{rawnet_forward.1} parent=11 // pred_fallthru
          _
        // Predicated region
        $region21: #{rawnet_forward.1} parent=11 // pred_check
          %p217 = pneg %p107
        $region22: #{rawnet_forward.1} parent=11 // pred_check_branch
          %219 = sbr.rel (%p217) target = $region24
        $region23: #{rawnet_forward.1} parent=11 // pred_region
          _
        $region24: #{rawnet_forward.1} parent=11 // pred_fallthru
          _
        // Predicated region
        $region25: #{rawnet_forward.1} parent=11 // pred_check
          %p220 = pneg %p128
        $region26: #{rawnet_forward.1} parent=11 // pred_check_branch
          %222 = sbr.rel (%p220) target = $region28
        $region27: #{rawnet_forward.1} parent=11 // pred_region
          _
        $region28: #{rawnet_forward.1} parent=11 // pred_fallthru
          _
        // Predicated region
        $region29: #{rawnet_forward.1} parent=11 // pred_check
          %p223 = pneg %p149
        $region30: #{rawnet_forward.1} parent=11 // pred_check_branch
          %225 = sbr.rel (%p223) target = $region32
        $region31: #{rawnet_forward.1} parent=11 // pred_region
          _
        $region32: #{rawnet_forward.1} parent=11 // pred_fallthru
          _
        // Predicated region
        $region33: #{rawnet_forward.1} parent=11 // pred_check
          %p226 = pneg %p170
        $region34: #{rawnet_forward.1} parent=11 // pred_check_branch
          %228 = sbr.rel (%p226) target = $region36
        $region35: #{rawnet_forward.1} parent=11 // pred_region
          _
        $region36: #{rawnet_forward.1} parent=11 // pred_fallthru
          _
      $region12: #{rawnet_forward.1} parent=5 // pred_fallthru
        _
      %p229 = scmp.lt.s32.totalorder %s18, 2
      // Predicated region
      $region37: #{rawnet_forward.1} parent=5 // pred_check
        %p230 = pneg %p229
      $region38: #{rawnet_forward.1} parent=5 // pred_check_branch
        %232 = sbr.rel (%p230) target = $region40
      $region39: #{rawnet_forward.1} parent=5 // pred_region
        // Predicated region
        $region41: #{rawnet_forward.1} parent=39 // pred_check
          %p233 = pneg %p38
        $region42: #{rawnet_forward.1} parent=39 // pred_check_branch
          %235 = sbr.rel (%p233) target = $region44
        $region43: #{rawnet_forward.1} parent=39 // pred_region
          %p236 = scmp.lt.s32.totalorder %s18, 1
          %s237 = scalar_select %p236, %s18, 1
          %s238 = smul.addr %s237, 2
          %s239 = scalar_lea.vmem %s0, %s238
        $region44: #{rawnet_forward.1} parent=39 // pred_fallthru
          _
      $region40: #{rawnet_forward.1} parent=5 // pred_fallthru
        _
      %p240 = scmp.le.s32.totalorder 1, %s18
      %p241 = scmp.lt.s32.totalorder %s18, 3
      %p242 = pnand %p240, %p241
      %p243 = pneg %p242
      // Predicated region
      $region45: #{rawnet_forward.1} parent=5 // pred_check
        _
      $region46: #{rawnet_forward.1} parent=5 // pred_check_branch
        %245 = sbr.rel (%p242) target = $region48
      $region47: #{rawnet_forward.1} parent=5 // pred_region
        %s246 = ssub.s32 %s18, 1
        %p247 = scmp.lt.s32.totalorder %s23, 1
        %s248 = scalar_select %p247, %s23, 1
        %s249 = smul.addr %s248, 2
        %s250 = scalar_lea.vmem %s0, %s249
        %p251 = pneg %p44
        %p252 = pneg %p41
        %p253 = pneg %p65
        %p254 = pneg %p62
        %p255 = pneg %p86
        %p256 = pneg %p83
        %p257 = pneg %p107
        %p258 = pneg %p104
        %p259 = pneg %p128
        %p260 = pneg %p125
        %p261 = pneg %p149
        %p262 = pneg %p146
        %p263 = pneg %p170
        %p264 = pneg %p167
        %p265 = pneg %p196
        %p266 = pneg %p193
        %s267 = sand.u32 %s183, 1
        %s268 = scalar_lea.sflag [#allocation4], %s267
        %s269 = sand.u32 %s183, 1
        %s270 = scalar_lea.vmem [#allocation3], %s269
        %p271 = scmp.lt.s32.totalorder %s23, 1
        %s272 = scalar_select %p271, %s23, 1
        %s273 = smul.addr %s272, 2
        %s274 = scalar_lea.vmem %s0, %s273
        %v275 = vld [vmem:[%s274] sm:$0x3]
        %v276 = vld [vmem:[%s1] sm:$0xff]
        %v277 = vld [vmem:[%s1 + $0x8] sm:$0xff]
        %v278 = vld [vmem:[%s1 + $0x10] sm:$0xff]
        %v279 = vld [vmem:[%s1 + $0x18] sm:$0xff]
        %v280 = vld [vmem:[%s2] sm:$0xff]
        %v281 = vld [vmem:[%s2 + $0x8] sm:$0xff]
        %v282 = vld [vmem:[%s2 + $0x10] sm:$0xff]
        %v283 = vld [vmem:[%s2 + $0x18] sm:$0xff]
        %285 = vset.pattern.permute.xlu0 0
        %286 = vperm.xlu0 %285, %v276
        %v287 = vpop.permute.xlu0 %286
        %290 = vset.pattern.permute.xlu0 0
        %291 = vperm.xlu0 %290, %v277
        %v292 = vpop.permute.xlu0 %291
        %295 = vset.pattern.permute.xlu0 0
        %296 = vperm.xlu0 %295, %v278
        %v297 = vpop.permute.xlu0 %296
        %300 = vset.pattern.permute.xlu0 0
        %301 = vperm.xlu0 %300, %v279
        %v302 = vpop.permute.xlu0 %301
        %v304 = vlaneseq
        %v305 = vshrl.u32 %v304, 7
        %v306 = vsub.s32 0, %v305
        %v307 = vrot.slane %v275, %v306
        %v308 = vmul.f32 %v287, %v307
        %v309 = vmul.f32 %v292, %v307
        %v310 = vmul.f32 %v297, %v307
        %v311 = vmul.f32 %v302, %v307
        %312 = vset.pattern.permute.xlu0 1
        %313 = vperm.xlu0 %312, %v276
        %v314 = vpop.permute.xlu0 %313
        %316 = vset.pattern.permute.xlu0 1
        %317 = vperm.xlu0 %316, %v277
        %v318 = vpop.permute.xlu0 %317
        %320 = vset.pattern.permute.xlu0 1
        %321 = vperm.xlu0 %320, %v278
        %v322 = vpop.permute.xlu0 %321
        %324 = vset.pattern.permute.xlu0 1
        %325 = vperm.xlu0 %324, %v279
        %v326 = vpop.permute.xlu0 %325
        %v328 = vlaneseq
        %v329 = vshrl.u32 %v328, 7
        %v330 = vsub.s32 1, %v329
        %v331 = vrot.slane %v275, %v330
        %v332 = vmul.f32 %v314, %v331
        %v333 = vmul.f32 %v318, %v331
        %v334 = vmul.f32 %v322, %v331
        %v335 = vmul.f32 %v326, %v331
        %v336 = vadd.f32 %v308, %v332
        %v337 = vadd.f32 %v309, %v333
        %v338 = vadd.f32 %v310, %v334
        %v339 = vadd.f32 %v311, %v335
        %341 = vset.pattern.permute.xlu0 0
        %342 = vperm.xlu0 %341, %v280
        %v343 = vpop.permute.xlu0 %342
        %346 = vset.pattern.permute.xlu0 0
        %347 = vperm.xlu0 %346, %v281
        %v348 = vpop.permute.xlu0 %347
        %351 = vset.pattern.permute.xlu0 0
        %352 = vperm.xlu0 %351, %v282
        %v353 = vpop.permute.xlu0 %352
        %356 = vset.pattern.permute.xlu0 0
        %357 = vperm.xlu0 %356, %v283
        %v358 = vpop.permute.xlu0 %357
        %v360 = vadd.f32 %v336, %v343
        %v361 = vadd.f32 %v337, %v348
        %v362 = vadd.f32 %v338, %v353
        %v363 = vadd.f32 %v339, %v358
        %v364 = vtanh.pop %v360
        %v365 = vtanh.pop %v361
        %v366 = vtanh.pop %v362
        %v367 = vtanh.pop %v363
        %v368 = vld [vmem:[%s3] sm:$0xff]
        %v369 = vld [vmem:[%s3 + $0x8] sm:$0xff]
        %v370 = vld [vmem:[%s3 + $0x10] sm:$0xff]
        %v371 = vld [vmem:[%s3 + $0x18] sm:$0xff]
        %v372 = vld [vmem:[%s3 + $0x20] sm:$0xff]
        %v373 = vld [vmem:[%s3 + $0x28] sm:$0xff]
        %v374 = vld [vmem:[%s3 + $0x30] sm:$0xff]
        %v375 = vld [vmem:[%s3 + $0x38] sm:$0xff]
        %v376 = vld [vmem:[%s4] sm:$0xff]
        %v377 = vld [vmem:[%s4 + $0x8] sm:$0xff]
        %v378 = vld [vmem:[%s4 + $0x10] sm:$0xff]
        %v379 = vld [vmem:[%s4 + $0x18] sm:$0xff]
        %v380 = vld [vmem:[%s4 + $0x20] sm:$0xff]
        %v381 = vld [vmem:[%s4 + $0x28] sm:$0xff]
        %v382 = vld [vmem:[%s4 + $0x30] sm:$0xff]
        %v383 = vld [vmem:[%s4 + $0x38] sm:$0xff]
        %385 = vset.pattern.permute.xlu0 0
        %386 = vperm.xlu0 %385, %v376
        %v387 = vpop.permute.xlu0 %386
        %390 = vset.pattern.permute.xlu0 0
        %391 = vperm.xlu0 %390, %v377
        %v392 = vpop.permute.xlu0 %391
        %395 = vset.pattern.permute.xlu0 0
        %396 = vperm.xlu0 %395, %v378
        %v397 = vpop.permute.xlu0 %396
        %400 = vset.pattern.permute.xlu0 0
        %401 = vperm.xlu0 %400, %v379
        %v402 = vpop.permute.xlu0 %401
        %405 = vset.pattern.permute.xlu0 0
        %406 = vperm.xlu0 %405, %v380
        %v407 = vpop.permute.xlu0 %406
        %410 = vset.pattern.permute.xlu0 0
        %411 = vperm.xlu0 %410, %v381
        %v412 = vpop.permute.xlu0 %411
        %415 = vset.pattern.permute.xlu0 0
        %416 = vperm.xlu0 %415, %v382
        %v417 = vpop.permute.xlu0 %416
        %420 = vset.pattern.permute.xlu0 0
        %421 = vperm.xlu0 %420, %v383
        %v422 = vpop.permute.xlu0 %421
        %vm424 = vcmask 261120
        %v426 = vsel %vm424, %v368, 0
        %v429 = vsel %vm424, %v369, 0
        %v432 = vsel %vm424, %v370, 0
        %v435 = vsel %vm424, %v371, 0
        %v438 = vsel %vm424, %v372, 0
        %v441 = vsel %vm424, %v373, 0
        %v444 = vsel %vm424, %v374, 0
        %v447 = vsel %vm424, %v375, 0
        %449 = vmatprep.subr.mxu0 0.0
        %450 = vmatpush1.msra.mxu0 %v364
        %451 = vmatprep.subr.mxu0 0.0
        %452 = vmatpush1.msra.mxu0 %v365
        %453 = vmatprep.subr.mxu0 0.0
        %454 = vmatpush1.msra.mxu0 %v366
        %455 = vmatprep.subr.mxu0 0.0
        %456 = vmatpush1.msra.mxu0 %v367
        %457 = vmatprep.subr.mxu0 0.0
        %458 = vmatpush1.msra.mxu0 0.0
        %459 = vmatprep.subr.mxu0 0.0
        %460 = vmatpush1.msra.mxu0 0.0
        %461 = vmatprep.subr.mxu0 0.0
        %462 = vmatpush1.msra.mxu0 0.0
        %463 = vmatprep.subr.mxu0 0.0
        %464 = vmatpush1.msra.mxu0 0.0
        %465 = vmatprep.subr.mxu0 0.0
        %466 = vmatpush1.msra.mxu0 0.0
        %467 = vmatprep.subr.mxu0 0.0
        %468 = vmatpush1.msra.mxu0 0.0
        %469 = vmatprep.subr.mxu0 0.0
        %470 = vmatpush1.msra.mxu0 0.0
        %471 = vmatprep.subr.mxu0 0.0
        %472 = vmatpush1.msra.mxu0 0.0
        %473 = vmatprep.subr.mxu0 0.0
        %474 = vmatpush1.msra.mxu0 0.0
        %475 = vmatprep.subr.mxu0 0.0
        %476 = vmatpush1.msra.mxu0 0.0
        %477 = vmatprep.subr.mxu0 0.0
        %478 = vmatpush1.msra.mxu0 0.0
        %479 = vmatprep.subr.mxu0 0.0
        %480 = vmatpush1.msra.mxu0 0.0
        %481 = vmatprep.subr.mxu0 0.0
        %482 = vmatpush1.msra.mxu0 0.0
        %483 = vmatprep.subr.mxu0 0.0
        %484 = vmatpush1.msra.mxu0 0.0
        %485 = vmatprep.subr.mxu0 0.0
        %486 = vmatpush1.msra.mxu0 0.0
        %487 = vmatprep.subr.mxu0 0.0
        %488 = vmatpush1.msra.mxu0 0.0
        %489 = vmatprep.subr.mxu0 0.0
        %490 = vmatpush1.msra.mxu0 0.0
        %491 = vmatprep.subr.mxu0 0.0
        %492 = vmatpush1.msra.mxu0 0.0
        %493 = vmatprep.subr.mxu0 0.0
        %494 = vmatpush1.msra.mxu0 0.0
        %495 = vmatprep.subr.mxu0 0.0
        %496 = vmatpush1.msra.mxu0 0.0
        %497 = vmatprep.subr.mxu0 0.0
        %498 = vmatpush1.msra.mxu0 0.0
        %499 = vmatprep.subr.mxu0 0.0
        %500 = vmatpush1.msra.mxu0 0.0
        %501 = vmatprep.subr.mxu0 0.0
        %502 = vmatpush1.msra.mxu0 0.0
        %503 = vmatprep.subr.mxu0 0.0
        %504 = vmatpush1.msra.mxu0 0.0
        %505 = vmatprep.subr.mxu0 0.0
        %506 = vmatpush1.msra.mxu0 0.0
        %507 = vmatprep.subr.mxu0 0.0
        %508 = vmatpush1.msra.mxu0 0.0
        %509 = vmatprep.subr.mxu0 0.0
        %510 = vmatpush1.msra.mxu0 0.0
        %511 = vmatprep.subr.mxu0 0.0
        %512 = vmatpush1.msra.mxu0 0.0
        %513 = vmatprep.mubr.f32.mxu0 0.0
        %514 = vmatmul.mubr.f32.gmra.mrb[0].mxu0 %v426
        %v515 = vpop.f32.mrb[0].mxu0
        %v516 = vadd.f32 %v387, %v515
        %v517 = vpop.f32.mrb[0].mxu0
        %518 = vmatprep.mubr.f32.mxu0 0.0
        %519 = vmatmul.mubr.f32.gmra.mrb[0].mxu0 %v429
        %v520 = vpop.f32.mrb[0].mxu0
        %v521 = vadd.f32 %v392, %v520
        %v522 = vpop.f32.mrb[0].mxu0
        %523 = vmatprep.mubr.f32.mxu0 0.0
        %524 = vmatmul.mubr.f32.gmra.mrb[0].mxu0 %v432
        %v525 = vpop.f32.mrb[0].mxu0
        %v526 = vadd.f32 %v397, %v525
        %v527 = vpop.f32.mrb[0].mxu0
        %528 = vmatprep.mubr.f32.mxu0 0.0
        %529 = vmatmul.mubr.f32.gmra.mrb[0].mxu0 %v435
        %v530 = vpop.f32.mrb[0].mxu0
        %v531 = vadd.f32 %v402, %v530
        %v532 = vpop.f32.mrb[0].mxu0
        %533 = vmatprep.mubr.f32.mxu0 0.0
        %534 = vmatmul.mubr.f32.gmra.mrb[0].mxu0 %v438
        %v535 = vpop.f32.mrb[0].mxu0
        %v536 = vadd.f32 %v407, %v535
        %v537 = vpop.f32.mrb[0].mxu0
        %538 = vmatprep.mubr.f32.mxu0 0.0
        %539 = vmatmul.mubr.f32.gmra.mrb[0].mxu0 %v441
        %v540 = vpop.f32.mrb[0].mxu0
        %v541 = vadd.f32 %v412, %v540
        %v542 = vpop.f32.mrb[0].mxu0
        %543 = vmatprep.mubr.f32.mxu0 0.0
        %544 = vmatmul.mubr.f32.gmra.mrb[0].mxu0 %v444
        %v545 = vpop.f32.mrb[0].mxu0
        %v546 = vadd.f32 %v417, %v545
        %v547 = vpop.f32.mrb[0].mxu0
        %548 = vmatprep.mubr.f32.mxu0 0.0
        %549 = vmatmul.mubr.f32.gmra.mrb[0].mxu0 %v447
        %v550 = vpop.f32.mrb[0].mxu0
        %v551 = vadd.f32 %v422, %v550
        %v552 = vpop.f32.mrb[0].mxu0
        %553 = vdwg.mxu0
        %v554 = vtanh.pop %v516
        %v555 = vtanh.pop %v521
        %v556 = vtanh.pop %v526
        %v557 = vtanh.pop %v531
        %v558 = vtanh.pop %v536
        %v559 = vtanh.pop %v541
        %v560 = vtanh.pop %v546
        %v561 = vtanh.pop %v551
        %v562 = vld [vmem:[%s5] sm:$0xff]
        %v563 = vld [vmem:[%s5 + $0x8] sm:$0xff]
        %v564 = vld [vmem:[%s5 + $0x10] sm:$0xff]
        %v565 = vld [vmem:[%s5 + $0x18] sm:$0xff]
        %v566 = vld [vmem:[%s5 + $0x20] sm:$0xff]
        %v567 = vld [vmem:[%s5 + $0x28] sm:$0xff]
        %v568 = vld [vmem:[%s5 + $0x30] sm:$0xff]
        %v569 = vld [vmem:[%s5 + $0x38] sm:$0xff]
        %571 = vset.pattern.permute.xlu0 0
        %572 = vperm.xlu0 %571, %v562
        %v573 = vpop.permute.xlu0 %572
        %576 = vset.pattern.permute.xlu0 0
        %577 = vperm.xlu0 %576, %v563
        %v578 = vpop.permute.xlu0 %577
        %581 = vset.pattern.permute.xlu0 0
        %582 = vperm.xlu0 %581, %v564
        %v583 = vpop.permute.xlu0 %582
        %586 = vset.pattern.permute.xlu0 0
        %587 = vperm.xlu0 %586, %v565
        %v588 = vpop.permute.xlu0 %587
        %591 = vset.pattern.permute.xlu0 0
        %592 = vperm.xlu0 %591, %v566
        %v593 = vpop.permute.xlu0 %592
        %596 = vset.pattern.permute.xlu0 0
        %597 = vperm.xlu0 %596, %v567
        %v598 = vpop.permute.xlu0 %597
        %601 = vset.pattern.permute.xlu0 0
        %602 = vperm.xlu0 %601, %v568
        %v603 = vpop.permute.xlu0 %602
        %606 = vset.pattern.permute.xlu0 0
        %607 = vperm.xlu0 %606, %v569
        %v608 = vpop.permute.xlu0 %607
        %v610 = vmul.f32 %v573, %v554
        %v611 = vmul.f32 %v578, %v555
        %v612 = vmul.f32 %v583, %v556
        %v613 = vmul.f32 %v588, %v557
        %v614 = vmul.f32 %v593, %v558
        %v615 = vmul.f32 %v598, %v559
        %v616 = vmul.f32 %v603, %v560
        %v617 = vmul.f32 %v608, %v561
        %v618 = vadd.f32 %v610, %v611
        %v619 = vadd.f32 %v618, %v612
        %v620 = vadd.f32 %v619, %v613
        %v621 = vadd.f32 %v620, %v614
        %v622 = vadd.f32 %v621, %v615
        %v623 = vadd.f32 %v622, %v616
        %v624 = vadd.f32 %v623, %v617
        %v625 = vrot.slane %v624, 4
        %v626 = vadd.f32 %v624, %v625
        %v627 = vrot.slane %v626, 2
        %v628 = vadd.f32 %v626, %v627
        %v629 = vrot.slane %v628, 1
        %v630 = vadd.f32 %v628, %v629
        %v631 = vld [vmem:[#allocation2] sm:$0x1]
        %633 = vset.pattern.permute.xlu0 0
        %634 = vperm.xlu0 %633, %v631
        %v635 = vpop.permute.xlu0 %634
        %v637 = vlaneseq
        %v638 = vshrl.u32 %v637, 7
        %v639 = vsub.s32 0, %v638
        %v640 = vrot.slane %v635, %v639
        %v641 = vadd.f32 %v630, %v640
        %v642 = vxor.u32 %v641, 2147483648
        %v643 = vmul.f32 %v642, 1.442695
        %v644 = vpow.pop %v643
        %v645 = vadd.f32 %v644, 1.0
        %v646 = vrcp.pop %v645
        %v647 = vmul.f32 1.0, %v646
        %648 = vst [vmem:[%s270] sm:$0x1] %v647
        %s649 = sand.u32 %s183, 1
        %s650 = scalar_lea.sflag [#allocation4], %s649
        %s651 = sand.u32 %s183, 1
        %s652 = scalar_lea.vmem [#allocation3], %s651
        // Predicated region
        $region49: #{rawnet_forward.1} parent=47 // pred_check
          %p653 = pneg %p193
        $region50: #{rawnet_forward.1} parent=47 // pred_check_branch
          %655 = sbr.rel (%p653) target = $region52
        $region51: #{rawnet_forward.1} parent=47 // pred_region
          %s657 = ssub.s32 16, 16
          %658 = vsyncadd %s650, %s657
          %s659 = smul.addr %s23, 16
          %s660 = scalar_lea.hbm %s7, %s659
          %s662 = sshll.u32 %s652, 4
          %s663 = int_to_ptr.vmem [resolvable:$true] %s662
          %665 = dma.vmem_to_hbm [thread:$0]  %s663, 16, %s660, %s650
        $region52: #{rawnet_forward.1} parent=47 // pred_fallthru
          _
      $region48: #{rawnet_forward.1} parent=5 // pred_fallthru
        _
      %p666 = scmp.le.s32.totalorder 2, %s18
      // Predicated region
      $region53: #{rawnet_forward.1} parent=5 // pred_check
        %p667 = pneg %p666
      $region54: #{rawnet_forward.1} parent=5 // pred_check_branch
        %669 = sbr.rel (%p667) target = $region56
      $region55: #{rawnet_forward.1} parent=5 // pred_region
        %s670 = ssub.s32 %s18, 2
        // Predicated region
        $region57: #{rawnet_forward.1} parent=55 // pred_check
          %p671 = pneg %p199
        $region58: #{rawnet_forward.1} parent=55 // pred_check_branch
          %673 = sbr.rel (%p671) target = $region60
        $region59: #{rawnet_forward.1} parent=55 // pred_region
          %s674 = sand.u32 %s184, 1
          %s675 = scalar_lea.sflag [#allocation4], %s674
          %s676 = sand.u32 %s184, 1
          %s677 = scalar_lea.vmem [#allocation3], %s676
          %678 = dma.done %s675, 16
        $region60: #{rawnet_forward.1} parent=55 // pred_fallthru
          _
      $region56: #{rawnet_forward.1} parent=5 // pred_fallthru
        _
    $region6: #{rawnet_forward.1} parent=1 // loop_footer
      %s22 = sadd.s32 1, %s18
    $region7: #{rawnet_forward.1} parent=1 // loop_footer_branch
      %17 = sbr.rel target = $region3
    $region8: #{rawnet_forward.1} parent=1 // loop_exit
      _
    %679 = vsyncpa [#allocation4], 1
    %s680 = scalar_lea.sflag [#allocation4], 1
    %681 = vsyncpa %s680, 1

</llo_original>
